<compile_context>
chip_gen: v5e
topology: v5e:2x2
jax: 0.10.0
libtpu: 0.0.40
codegen_flags: <defaults>
</compile_context>

<pallas_src>
import functools

import jax
import jax.numpy as jnp
from jax.experimental import pallas as pl
from jax.experimental.pallas import tpu as pltpu


def _round_up(x, m):
    return ((x + m - 1) // m) * m


def _bce_dice_kernel(x_ref, t_ref, out_ref,
                     bce_acc, inter_acc, psum_acc, tsum_acc,
                     *, n_tiles, tile_c, f_valid, needs_mask):
    tile = pl.program_id(1)

    @pl.when(tile == 0)
    def _init():
        bce_acc[...] = jnp.zeros_like(bce_acc)
        inter_acc[...] = jnp.zeros_like(inter_acc)
        psum_acc[...] = jnp.zeros_like(psum_acc)
        tsum_acc[...] = jnp.zeros_like(tsum_acc)

    x = x_ref[...].astype(jnp.float32)
    t = t_ref[...].astype(jnp.float32)

    # One exp per element, shared by the BCE softplus term and the sigmoid.
    e = jnp.exp(-jnp.abs(x))                     # exp(-|x|) in (0, 1]
    softplus = jnp.log1p(e)                      # exact at x == 0 (matches log1p ref)
    bce_elem = jnp.maximum(x, 0.0) - x * t + softplus

    # Stable sigmoid.  EUP approx reciprocal + one Newton step gives ~f32
    # accuracy while moving the seed off the VPU divide sequence.
    one_pe = 1.0 + e
    r = pl.reciprocal(one_pe, approx=True)
    r = r * (2.0 - one_pe * r)                   # Newton refinement
    p = jnp.where(x >= 0, r, e * r)              # sigmoid(x)

    def _accumulate(bce_v, p_v, t_v):
        bce_acc[...] += jnp.sum(bce_v, axis=1, keepdims=True)
        inter_acc[...] += jnp.sum(p_v * t_v, axis=1, keepdims=True)
        psum_acc[...] += jnp.sum(p_v, axis=1, keepdims=True)
        tsum_acc[...] += jnp.sum(t_v, axis=1, keepdims=True)

    if needs_mask:
        chunk = pl.program_id(0)
        col0 = (chunk * n_tiles + tile) * tile_c   # logical (unclamped) column start
        is_partial = col0 + tile_c > f_valid

        @pl.when(is_partial)
        def _boundary():
            # Select-based mask (NOT multiply-by-0) so OOB garbage (NaN/Inf)
            # in the overhanging / duplicated tile contributes exactly zero.
            cols = col0 + jax.lax.broadcasted_iota(jnp.int32, x.shape, 1)
            valid = cols < f_valid
            _accumulate(jnp.where(valid, bce_elem, 0.0),
                        jnp.where(valid, p, 0.0),
                        jnp.where(valid, t, 0.0))

        @pl.when(jnp.logical_not(is_partial))
        def _interior():
            _accumulate(bce_elem, p, t)
    else:
        _accumulate(bce_elem, p, t)

    @pl.when(tile == n_tiles - 1)
    def _finalize():
        out_ref[0, :, :] = jnp.concatenate(
            [bce_acc[...], inter_acc[...], psum_acc[...], tsum_acc[...]],
            axis=1)


def _device_kind():
    try:
        devs = jax.devices()
        if devs:
            return (getattr(devs[0], "device_kind", "") or "").lower()
    except Exception:
        pass
    return ""


def bce_dice_loss(logits, target, smooth):
    """logits, target: (N, C, H, W), any float/bool dtype. Returns scalar f32."""
    n = logits.shape[0]
    f_total = 1
    for d in logits.shape[1:]:
        f_total *= d

    is_v7x = "v7" in _device_kind()

    # Sublane packing: split each sample into g contiguous sub-rows so the
    # (rows, tile_c) blocks fill the vreg sublanes (8 for f32, 16 for bf16).
    sub32 = min(logits.dtype.itemsize, target.dtype.itemsize) < 4
    target_rows = 16 if sub32 else 8
    g = 1
    if n % target_rows != 0:
        for cand in (2, 4, 8, 16):
            if f_total % cand == 0 and (n * cand) % target_rows == 0:
                g = cand
                break
    rows = n * g
    f_sub = f_total // g

    x2d = logits.reshape(rows, f_sub)     # native dtype; cast happens in-kernel
    t2d = target.reshape(rows, f_sub)

    # --- grid geometry ------------------------------------------------------
    # Per-input block budget (f32-equivalent bytes): big enough to hit the
    # HBM roofline, small enough to leave VMEM headroom for f32 temporaries.
    budget_f32 = (2 << 20) if is_v7x else (4 << 20)
    tile_cap = max(128, (budget_f32 // (rows * 4)) // 128 * 128)

    num_chunks = 2 if is_v7x else 1                      # 2 TCs only on v7x
    tile_c = min(tile_cap, _round_up(pl.cdiv(f_sub, num_chunks), 128))
    total_tiles = pl.cdiv(f_sub, tile_c)
    num_chunks = min(num_chunks, total_tiles)
    n_tiles = pl.cdiv(total_tiles, num_chunks)

    needs_mask = (total_tiles * tile_c != f_sub) or (num_chunks * n_tiles != total_tiles)

    last_tile = total_tiles - 1
    if num_chunks * n_tiles == total_tiles:
        def in_map(c, t):
            return (0, c * n_tiles + t)
    else:
        # Odd tile count split over 2 chunks: clamp the duplicated trailing
        # tile in-bounds; its logical columns are >= f_sub so it is masked out.
        def in_map(c, t):
            return (0, jnp.minimum(c * n_tiles + t, last_tile))

    kernel = functools.partial(
        _bce_dice_kernel,
        n_tiles=n_tiles, tile_c=tile_c, f_valid=f_sub, needs_mask=needs_mask)

    in_block_bytes = rows * tile_c * (x2d.dtype.itemsize + t2d.dtype.itemsize)
    f32_block_bytes = rows * tile_c * 4
    vmem_cap = (48 << 20) if is_v7x else (80 << 20)      # v7x: 64 MiB/TC physical
    vmem_limit = int(min(vmem_cap,
                         max(32 << 20, 2 * in_block_bytes + 10 * f32_block_bytes)))

    if is_v7x and num_chunks == 2:
        # Genuinely shard the chunk axis across the two v7x TensorCores.
        dim_sem = (getattr(pltpu, "CORE_PARALLEL", "parallel"),
                   getattr(pltpu, "ARBITRARY", "arbitrary"))
    else:
        dim_sem = ("parallel", "arbitrary")

    parts = pl.pallas_call(
        kernel,
        out_shape=jax.ShapeDtypeStruct((num_chunks, rows, 4), jnp.float32),
        grid=(num_chunks, n_tiles),
        in_specs=[
            pl.BlockSpec((rows, tile_c), in_map),
            pl.BlockSpec((rows, tile_c), in_map),
        ],
        out_specs=pl.BlockSpec((1, rows, 4), lambda c, t: (c, 0, 0)),
        scratch_shapes=[pltpu.VMEM((rows, 1), jnp.float32) for _ in range(4)],
        compiler_params=pltpu.CompilerParams(
            dimension_semantics=dim_sem,
            vmem_limit_bytes=vmem_limit),
    )(x2d, t2d)

    # Final O(N) combine in plain JAX (matches the PyTorch module exactly).
    totals = jnp.sum(parts, axis=0)                      # (rows, 4)
    per_sample = totals.reshape(n, g, 4).sum(axis=1)     # (n, 4)

    smooth = jnp.asarray(smooth, jnp.float32)
    bce = per_sample[:, 0].sum() / jnp.float32(n * f_total)
    inter = per_sample[:, 1]
    p_sum = per_sample[:, 2]
    t_sum = per_sample[:, 3]
    dice = (2.0 * inter + smooth) / (p_sum + t_sum + smooth)
    dice_loss = 1.0 - jnp.sum(dice) / jnp.float32(n)
    return 0.5 * bce + dice_loss


def _reference(logits, target, smooth):
    x = logits.astype(jnp.float32)
    t = target.astype(jnp.float32)
    bce = jnp.mean(jnp.maximum(x, 0.0) - x * t + jnp.log1p(jnp.exp(-jnp.abs(x))))
    n = x.shape[0]
    p = jax.nn.sigmoid(x).reshape(n, -1)
    tt = t.reshape(n, -1)
    inter = jnp.sum(p * tt, axis=1)
    dice = (2.0 * inter + smooth) / (jnp.sum(p, axis=1) + jnp.sum(tt, axis=1) + smooth)
    dice_loss = 1.0 - jnp.sum(dice) / n
    return 0.5 * bce + dice_loss


if __name__ == "__main__":
    key = jax.random.PRNGKey(0)
    k1, k2, k3, k4 = jax.random.split(key, 4)
    smooth = 1.0

    # Primary shape implied by the module: (N, C, H, W).
    N, C, H, W = 2, 4, 16, 16
    logits = jax.random.normal(k1, (N, C, H, W), dtype=jnp.float32)
    target = (jax.random.uniform(k2, (N, C, H, W)) > 0.5).astype(jnp.float32)

    loss = bce_dice_loss(logits, target, smooth)
    jax.block_until_ready(loss)
    ref = _reference(logits, target, smooth)
    assert jnp.allclose(loss, ref, atol=1e-4, rtol=1e-4), (loss, ref)

    # Non-tile-aligned shape exercises the partial tail block + mask path.
    N2, C2, H2, W2 = 3, 3, 7, 5
    logits2 = jax.random.normal(k3, (N2, C2, H2, W2), dtype=jnp.float32)
    target2 = (jax.random.uniform(k4, (N2, C2, H2, W2)) > 0.5).astype(jnp.float32)

    loss2 = bce_dice_loss(logits2, target2, smooth)
    jax.block_until_ready(loss2)
    ref2 = _reference(logits2, target2, smooth)
    assert jnp.allclose(loss2, ref2, atol=1e-4, rtol=1e-4), (loss2, ref2)

    print("KERNEL_OK")
</pallas_src>

<mosaic_0001>
module attributes {stable_mosaic.version = 11 : i64} {
  func.func @_bce_dice_kernel(%arg0: i32, %arg1: i32, %arg2: memref<8x256xf32, #tpu.memory_space<vmem>>, %arg3: memref<8x256xf32, #tpu.memory_space<vmem>>, %arg4: memref<1x8x4xf32, #tpu.memory_space<vmem>>, %arg5: memref<8x1xf32, #tpu.memory_space<vmem>>, %arg6: memref<8x1xf32, #tpu.memory_space<vmem>>, %arg7: memref<8x1xf32, #tpu.memory_space<vmem>>, %arg8: memref<8x1xf32, #tpu.memory_space<vmem>>) attributes {dimension_semantics = [#tpu.dimension_semantics<parallel>, #tpu.dimension_semantics<arbitrary>], iteration_bounds = array<i64: 1, 1>, scalar_prefetch = 0 : i64, scratch_operands = 4 : i64, tpu.core_type = #tpu.core_type<tc>, window_params = [{transform_indices = @transform_0, window_bounds = array<i64: 8, 256>}, {transform_indices = @transform_1, window_bounds = array<i64: 8, 256>}, {transform_indices = @transform_2, window_bounds = array<i64: 1, 8, 4>}]} {
    %c0_i32 = arith.constant 0 : i32
    %0 = arith.cmpi eq, %arg1, %c0_i32 : i32
    %1 = arith.extui %0 : i1 to i32
    %c0_i32_0 = arith.constant 0 : i32
    %2 = arith.cmpi ne, %1, %c0_i32_0 : i32
    scf.if %2 {
      %cst_30 = arith.constant 0.000000e+00 : f32
      %50 = vector.broadcast %cst_30 : f32 to vector<8x1xf32>
      %c0_31 = arith.constant 0 : index
      %c0_32 = arith.constant 0 : index
      %51 = vector.load %arg5[%c0_31, %c0_32] : memref<8x1xf32, #tpu.memory_space<vmem>>, vector<8x1xf32>
      tpu.vector_store %arg5[%c0_31, %c0_32], %50 {strides = array<i32>} : memref<8x1xf32, #tpu.memory_space<vmem>>, vector<8x1xf32>,
      %cst_33 = arith.constant 0.000000e+00 : f32
      %52 = vector.broadcast %cst_33 : f32 to vector<8x1xf32>
      %c0_34 = arith.constant 0 : index
      %c0_35 = arith.constant 0 : index
      %53 = vector.load %arg6[%c0_34, %c0_35] : memref<8x1xf32, #tpu.memory_space<vmem>>, vector<8x1xf32>
      tpu.vector_store %arg6[%c0_34, %c0_35], %52 {strides = array<i32>} : memref<8x1xf32, #tpu.memory_space<vmem>>, vector<8x1xf32>,
      %cst_36 = arith.constant 0.000000e+00 : f32
      %54 = vector.broadcast %cst_36 : f32 to vector<8x1xf32>
      %c0_37 = arith.constant 0 : index
      %c0_38 = arith.constant 0 : index
      %55 = vector.load %arg7[%c0_37, %c0_38] : memref<8x1xf32, #tpu.memory_space<vmem>>, vector<8x1xf32>
      tpu.vector_store %arg7[%c0_37, %c0_38], %54 {strides = array<i32>} : memref<8x1xf32, #tpu.memory_space<vmem>>, vector<8x1xf32>,
      %cst_39 = arith.constant 0.000000e+00 : f32
      %56 = vector.broadcast %cst_39 : f32 to vector<8x1xf32>
      %c0_40 = arith.constant 0 : index
      %c0_41 = arith.constant 0 : index
      %57 = vector.load %arg8[%c0_40, %c0_41] : memref<8x1xf32, #tpu.memory_space<vmem>>, vector<8x1xf32>
      tpu.vector_store %arg8[%c0_40, %c0_41], %56 {strides = array<i32>} : memref<8x1xf32, #tpu.memory_space<vmem>>, vector<8x1xf32>,
    } else {
    }
    %c0 = arith.constant 0 : index
    %c0_1 = arith.constant 0 : index
    %3 = vector.load %arg2[%c0, %c0_1] : memref<8x256xf32, #tpu.memory_space<vmem>>, vector<8x256xf32>
    %c0_2 = arith.constant 0 : index
    %c0_3 = arith.constant 0 : index
    %4 = vector.load %arg3[%c0_2, %c0_3] : memref<8x256xf32, #tpu.memory_space<vmem>>, vector<8x256xf32>
    %5 = math.absf %3 : vector<8x256xf32>
    %cst = arith.constant 0.000000e+00 : f32
    %6 = vector.broadcast %cst : f32 to vector<8x256xf32>
    %7 = arith.subf %6, %5 : vector<8x256xf32>
    %8 = math.exp %7 : vector<8x256xf32>
    %9 = math.log1p %8 : vector<8x256xf32>
    %cst_4 = arith.constant 0.000000e+00 : f32
    %10 = vector.broadcast %cst_4 : f32 to vector<8x256xf32>
    %11 = arith.maximumf %3, %10 : vector<8x256xf32>
    %12 = arith.mulf %3, %4 : vector<8x256xf32>
    %13 = arith.subf %11, %12 : vector<8x256xf32>
    %14 = arith.addf %13, %9 : vector<8x256xf32>
    %cst_5 = arith.constant 1.000000e+00 : f32
    %15 = vector.broadcast %cst_5 : f32 to vector<8x256xf32>
    %16 = arith.addf %15, %8 : vector<8x256xf32>
    %17 = tpu.reciprocal %16 {approx = true} : vector<8x256xf32> -> vector<8x256xf32>
    %18 = arith.mulf %16, %17 : vector<8x256xf32>
    %cst_6 = arith.constant 2.000000e+00 : f32
    %19 = vector.broadcast %cst_6 : f32 to vector<8x256xf32>
    %20 = arith.subf %19, %18 : vector<8x256xf32>
    %21 = arith.mulf %17, %20 : vector<8x256xf32>
    %cst_7 = arith.constant 0.000000e+00 : f32
    %22 = vector.broadcast %cst_7 : f32 to vector<8x256xf32>
    %23 = arith.cmpf oge, %3, %22 : vector<8x256xf32>
    %24 = arith.mulf %8, %21 : vector<8x256xf32>
    %25 = arith.select %23, %21, %24 : vector<8x256xi1>, vector<8x256xf32>
    %c0_8 = arith.constant 0 : index
    %c0_9 = arith.constant 0 : index
    %26 = vector.load %arg5[%c0_8, %c0_9] : memref<8x1xf32, #tpu.memory_space<vmem>>, vector<8x1xf32>
    %cst_10 = arith.constant dense<0.000000e+00> : vector<8xf32>
    %27 = vector.multi_reduction <add>, %14, %cst_10 [1] : vector<8x256xf32> to vector<8xf32>
    %28 = vector.shape_cast %27 : vector<8xf32> to vector<8x1xf32>
    %29 = arith.addf %26, %28 : vector<8x1xf32>
    %c0_11 = arith.constant 0 : index
    %c0_12 = arith.constant 0 : index
    %30 = vector.load %arg5[%c0_11, %c0_12] : memref<8x1xf32, #tpu.memory_space<vmem>>, vector<8x1xf32>
    tpu.vector_store %arg5[%c0_11, %c0_12], %29 {strides = array<i32>} : memref<8x1xf32, #tpu.memory_space<vmem>>, vector<8x1xf32>,
    %c0_13 = arith.constant 0 : index
    %c0_14 = arith.constant 0 : index
    %31 = vector.load %arg6[%c0_13, %c0_14] : memref<8x1xf32, #tpu.memory_space<vmem>>, vector<8x1xf32>
    %32 = arith.mulf %25, %4 : vector<8x256xf32>
    %cst_15 = arith.constant dense<0.000000e+00> : vector<8xf32>
    %33 = vector.multi_reduction <add>, %32, %cst_15 [1] : vector<8x256xf32> to vector<8xf32>
    %34 = vector.shape_cast %33 : vector<8xf32> to vector<8x1xf32>
    %35 = arith.addf %31, %34 : vector<8x1xf32>
    %c0_16 = arith.constant 0 : index
    %c0_17 = arith.constant 0 : index
    %36 = vector.load %arg6[%c0_16, %c0_17] : memref<8x1xf32, #tpu.memory_space<vmem>>, vector<8x1xf32>
    tpu.vector_store %arg6[%c0_16, %c0_17], %35 {strides = array<i32>} : memref<8x1xf32, #tpu.memory_space<vmem>>, vector<8x1xf32>,
    %c0_18 = arith.constant 0 : index
    %c0_19 = arith.constant 0 : index
    %37 = vector.load %arg7[%c0_18, %c0_19] : memref<8x1xf32, #tpu.memory_space<vmem>>, vector<8x1xf32>
    %cst_20 = arith.constant dense<0.000000e+00> : vector<8xf32>
    %38 = vector.multi_reduction <add>, %25, %cst_20 [1] : vector<8x256xf32> to vector<8xf32>
    %39 = vector.shape_cast %38 : vector<8xf32> to vector<8x1xf32>
    %40 = arith.addf %37, %39 : vector<8x1xf32>
    %c0_21 = arith.constant 0 : index
    %c0_22 = arith.constant 0 : index
    %41 = vector.load %arg7[%c0_21, %c0_22] : memref<8x1xf32, #tpu.memory_space<vmem>>, vector<8x1xf32>
    tpu.vector_store %arg7[%c0_21, %c0_22], %40 {strides = array<i32>} : memref<8x1xf32, #tpu.memory_space<vmem>>, vector<8x1xf32>,
    %c0_23 = arith.constant 0 : index
    %c0_24 = arith.constant 0 : index
    %42 = vector.load %arg8[%c0_23, %c0_24] : memref<8x1xf32, #tpu.memory_space<vmem>>, vector<8x1xf32>
    %cst_25 = arith.constant dense<0.000000e+00> : vector<8xf32>
    %43 = vector.multi_reduction <add>, %4, %cst_25 [1] : vector<8x256xf32> to vector<8xf32>
    %44 = vector.shape_cast %43 : vector<8xf32> to vector<8x1xf32>
    %45 = arith.addf %42, %44 : vector<8x1xf32>
    %c0_26 = arith.constant 0 : index
    %c0_27 = arith.constant 0 : index
    %46 = vector.load %arg8[%c0_26, %c0_27] : memref<8x1xf32, #tpu.memory_space<vmem>>, vector<8x1xf32>
    tpu.vector_store %arg8[%c0_26, %c0_27], %45 {strides = array<i32>} : memref<8x1xf32, #tpu.memory_space<vmem>>, vector<8x1xf32>,
    %c0_i32_28 = arith.constant 0 : i32
    %47 = arith.cmpi eq, %arg1, %c0_i32_28 : i32
    %48 = arith.extui %47 : i1 to i32
    %c0_i32_29 = arith.constant 0 : i32
    %49 = arith.cmpi ne, %48, %c0_i32_29 : i32
    scf.if %49 {
      %c0_30 = arith.constant 0 : index
      %c0_31 = arith.constant 0 : index
      %50 = vector.load %arg5[%c0_30, %c0_31] : memref<8x1xf32, #tpu.memory_space<vmem>>, vector<8x1xf32>
      %c0_32 = arith.constant 0 : index
      %c0_33 = arith.constant 0 : index
      %51 = vector.load %arg6[%c0_32, %c0_33] : memref<8x1xf32, #tpu.memory_space<vmem>>, vector<8x1xf32>
      %c0_34 = arith.constant 0 : index
      %c0_35 = arith.constant 0 : index
      %52 = vector.load %arg7[%c0_34, %c0_35] : memref<8x1xf32, #tpu.memory_space<vmem>>, vector<8x1xf32>
      %c0_36 = arith.constant 0 : index
      %c0_37 = arith.constant 0 : index
      %53 = vector.load %arg8[%c0_36, %c0_37] : memref<8x1xf32, #tpu.memory_space<vmem>>, vector<8x1xf32>
      %54 = tpu.concatenate %50, %51, %52, %53 in 1 : vector<8x1xf32>, vector<8x1xf32>, vector<8x1xf32>, vector<8x1xf32> -> vector<8x4xf32>
      %c0_38 = arith.constant 0 : index
      %c0_39 = arith.constant 0 : index
      %c0_40 = arith.constant 0 : index
      %55 = vector.load %arg4[%c0_38, %c0_39, %c0_40] : memref<1x8x4xf32, #tpu.memory_space<vmem>>, vector<1x8x4xf32>
      %56 = vector.shape_cast %55 : vector<1x8x4xf32> to vector<8x4xf32>
      %57 = vector.shape_cast %54 : vector<8x4xf32> to vector<1x8x4xf32>
      tpu.vector_store %arg4[%c0_38, %c0_39, %c0_40], %57 {strides = array<i32>} : memref<1x8x4xf32, #tpu.memory_space<vmem>>, vector<1x8x4xf32>,
    } else {
    }
    return
  }
  func.func @transform_0(%arg0: i32, %arg1: i32) -> (i32, i32) {
    %c1_i32 = arith.constant 1 : i32
    %0 = arith.muli %arg0, %c1_i32 : i32
    %1 = arith.addi %0, %arg1 : i32
    %c0_i32 = arith.constant 0 : i32
    %c0_i32_0 = arith.constant 0 : i32
    return %c0_i32, %1 : i32, i32
  }
  func.func @transform_1(%arg0: i32, %arg1: i32) -> (i32, i32) {
    %c1_i32 = arith.constant 1 : i32
    %0 = arith.muli %arg0, %c1_i32 : i32
    %1 = arith.addi %0, %arg1 : i32
    %c0_i32 = arith.constant 0 : i32
    %c0_i32_0 = arith.constant 0 : i32
    return %c0_i32, %1 : i32, i32
  }
  func.func @transform_2(%arg0: i32, %arg1: i32) -> (i32, i32, i32) {
    %c0_i32 = arith.constant 0 : i32
    %c0_i32_0 = arith.constant 0 : i32
    %c0_i32_1 = arith.constant 0 : i32
    return %arg0, %c0_i32, %c0_i32_0 : i32, i32, i32
  }
}

</mosaic_0001>

<llo_original>
// kernel: tpu_custom_call.1
$region0: #{tpu_custom_call.1}
  #allocation0 [shape = 'u32[]', space=smem, size = 0x4, offset = 0x4, fixed_abs, tag = 'smem constant byte address 0x4 - core index']
  #allocation1 [shape = 'u32[72,128]{1,0:T(1,128)}', space=vmem, size = 0x9000, scoped, tag = 'internal scratch']
  #allocation2 [shape = 'f32[8,1]{1,0:T(8,128)}', space=vmem, size = 0x1000, scoped, tag = 'scratch operand']
  #allocation3 [shape = 'f32[8,1]{1,0:T(8,128)}', space=vmem, size = 0x1000, scoped, tag = 'scratch operand']
  #allocation4 [shape = 'f32[8,1]{1,0:T(8,128)}', space=vmem, size = 0x1000, scoped, tag = 'scratch operand']
  #allocation5 [shape = 'f32[8,1]{1,0:T(8,128)}', space=vmem, size = 0x1000, scoped, tag = 'scratch operand']
  %s0 = inlined_call_operand.hbm [shape: f32[8,256], index: 0, kind: input, shape index: {}]
  %s1 = inlined_call_operand.hbm [shape: f32[8,256], index: 1, kind: input, shape index: {}]
  %s2 = inlined_call_operand.vmem [shape: f32[1,8,4], index: 2, kind: output, shape index: {}]
  %s3 = sld [smem:[#allocation0]]
  $region34: #{tpu_custom_call.1} parent=0
    _
  %s5 = ssub.s32 1, %s3
  %s6 = scalar_select 0, %s5, %s3
  $region1: #{tpu_custom_call.1} parent=0
    #allocation6 [shape = 'u8[8192]{0}', space=vmem, size = 0x2000, scoped, tag = 'input window, operand 0, single buffered']
    #allocation7 [shape = 's32[1]{0}', space=sflag, size = 0x4, scoped, tag = 'scoped memory for tpu_custom_call.1']
    #allocation8 [shape = 'u8[8192]{0}', space=vmem, size = 0x2000, scoped, tag = 'input window, operand 1, single buffered']
    #allocation9 [shape = 's32[1]{0}', space=sflag, size = 0x4, scoped, tag = 'scoped memory for tpu_custom_call.1']
    %7 = vsyncpa [#allocation7], 0
    %8 = vsyncpa [#allocation9], 0
    // Predicated region
    $region2: #{tpu_custom_call.1} parent=1 // pred_check
      _
    $region3: #{tpu_custom_call.1} parent=1 // pred_check_branch
      %10 = sbr.rel (0) target = $region5
    $region4: #{tpu_custom_call.1} parent=1 // pred_region
      %s11 = sadd.s32 0, 0
      %s12 = smul.u32 2, %s11
      %14 = vsyncadd [#allocation7], 0
      %s15 = smul.addr %s12, 8
      %s16 = scalar_lea.hbm %s0, %s15
      %s18 = sshll.u32 %s16, 4
      %s19 = int_to_ptr.hbm [resolvable:$true] %s18
      %s20 = sshll.u32 [#allocation6], 4
      %s21 = int_to_ptr.vmem [resolvable:$true] %s20
      %23 = dma.hbm_to_vmem [thread:$0]  %s19, 256, %s21, [#allocation7]
    $region5: #{tpu_custom_call.1} parent=1 // pred_fallthru
      _
    // Predicated region
    $region6: #{tpu_custom_call.1} parent=1 // pred_check
      _
    $region7: #{tpu_custom_call.1} parent=1 // pred_check_branch
      %25 = sbr.rel (0) target = $region9
    $region8: #{tpu_custom_call.1} parent=1 // pred_region
      %s26 = sadd.s32 0, 0
      %s27 = smul.u32 2, %s26
      %29 = vsyncadd [#allocation9], 0
      %s30 = smul.addr %s27, 8
      %s31 = scalar_lea.hbm %s1, %s30
      %s33 = sshll.u32 %s31, 4
      %s34 = int_to_ptr.hbm [resolvable:$true] %s33
      %s35 = sshll.u32 [#allocation8], 4
      %s36 = int_to_ptr.vmem [resolvable:$true] %s35
      %38 = dma.hbm_to_vmem [thread:$0]  %s34, 256, %s36, [#allocation9]
    $region9: #{tpu_custom_call.1} parent=1 // pred_fallthru
      _
    // Predicated region
    $region10: #{tpu_custom_call.1} parent=1 // pred_check
      _
    $region11: #{tpu_custom_call.1} parent=1 // pred_check_branch
      %40 = sbr.rel (0) target = $region13
    $region12: #{tpu_custom_call.1} parent=1 // pred_region
      %42 = dma.done [#allocation7], 256
    $region13: #{tpu_custom_call.1} parent=1 // pred_fallthru
      _
    // Predicated region
    $region14: #{tpu_custom_call.1} parent=1 // pred_check
      _
    $region15: #{tpu_custom_call.1} parent=1 // pred_check_branch
      %44 = sbr.rel (0) target = $region17
    $region16: #{tpu_custom_call.1} parent=1 // pred_region
      %46 = dma.done [#allocation9], 256
    $region17: #{tpu_custom_call.1} parent=1 // pred_fallthru
      _
    %s47 = sadd.s32 0, 0
    %s48 = smul.u32 2, %s47
    %s49 = sadd.s32 0, 0
    %s50 = smul.u32 2, %s49
    %p51 = scmp.eq.s32.totalorder 0, 0
    // Predicated region
    $region18: #{tpu_custom_call.1} parent=1 // pred_check
      %p52 = pneg %p51
    $region19: #{tpu_custom_call.1} parent=1 // pred_check_branch
      %54 = sbr.rel (%p52) target = $region21
    $region20: #{tpu_custom_call.1} parent=1 // pred_region
      %vm55 = vcmask 7168
      %56 = vst.msk [vmem:[#allocation2] sm:$0xff] %vm55, 0.0
      %57 = vst.msk [vmem:[#allocation3] sm:$0xff] %vm55, 0.0
      %58 = vst.msk [vmem:[#allocation4] sm:$0xff] %vm55, 0.0
      %59 = vst.msk [vmem:[#allocation5] sm:$0xff] %vm55, 0.0
    $region21: #{tpu_custom_call.1} parent=1 // pred_fallthru
      _
    %v60 = vld [vmem:[#allocation6] sm:$0xff]
    %v61 = vld [vmem:[#allocation6 + $0x8] sm:$0xff]
    %v62 = vld [vmem:[#allocation8] sm:$0xff]
    %v63 = vld [vmem:[#allocation8 + $0x8] sm:$0xff]
    %v64 = vand.u32 2147483647, %v60
    %v65 = vand.u32 2147483647, %v61
    %v66 = vsub.f32 0.0, %v64
    %v67 = vsub.f32 0.0, %v65
    %v68 = vmul.f32 %v66, 1.442695
    %v69 = vpow.pop %v68
    %v70 = vmul.f32 %v67, 1.442695
    %v71 = vpow.pop %v70
    %v72 = vadd.f32 %v69, 1.0
    %v73 = vlog2.pop %v72
    %v74 = vmul.f32 %v73, 0.6931472
    %v75 = vmul.f32 -0.5, %v69
    %v76 = vadd.f32 %v75, 1.0
    %v77 = vmul.f32 %v76, %v69
    %v78 = vand.u32 2147483647, %v69
    %vm79 = vcmp.lt.f32.partialorder %v78, 0.0004427343
    %v80 = vsel %vm79, %v77, %v74
    %v81 = vadd.f32 %v71, 1.0
    %v82 = vlog2.pop %v81
    %v83 = vmul.f32 %v82, 0.6931472
    %v84 = vmul.f32 -0.5, %v71
    %v85 = vadd.f32 %v84, 1.0
    %v86 = vmul.f32 %v85, %v71
    %v87 = vand.u32 2147483647, %v71
    %vm88 = vcmp.lt.f32.partialorder %v87, 0.0004427343
    %v89 = vsel %vm88, %v86, %v83
    %v90 = vmax.f32 %v60, 0.0
    %v91 = vmax.f32 %v61, 0.0
    %v92 = vmul.f32 %v60, %v62
    %v93 = vmul.f32 %v61, %v63
    %v94 = vsub.f32 %v90, %v92
    %v95 = vsub.f32 %v91, %v93
    %v96 = vadd.f32 %v94, %v80
    %v97 = vadd.f32 %v95, %v89
    %v98 = vadd.f32 %v69, 1.0
    %v99 = vadd.f32 %v71, 1.0
    %v100 = vrcp.pop %v98
    %v101 = vrcp.pop %v99
    %v102 = vmul.f32 %v98, %v100
    %v103 = vmul.f32 %v99, %v101
    %v104 = vsub.f32 2.0, %v102
    %v105 = vsub.f32 2.0, %v103
    %v106 = vmul.f32 %v100, %v104
    %v107 = vmul.f32 %v101, %v105
    %vm108 = vcmp.ge.f32.partialorder %v60, 0.0
    %vm109 = vcmp.ge.f32.partialorder %v61, 0.0
    %v110 = vmul.f32 %v69, %v106
    %v111 = vmul.f32 %v71, %v107
    %v112 = vsel %vm108, %v106, %v110
    %v113 = vsel %vm109, %v107, %v111
    %v114 = vld [vmem:[#allocation2] sm:$0xff]
    %v115 = vadd.f32 %v96, %v97
    %116 = vadd.xlane.f32.xlu0 %v115
    %v117 = vpop.xlane.xlu0 %116
    %v118 = vadd.f32 %v114, %v117
    %vm119 = vcmask 7168
    %120 = vst.msk [vmem:[#allocation2] sm:$0xff] %vm119, %v118
    %v121 = vld [vmem:[#allocation3] sm:$0xff]
    %v122 = vmul.f32 %v112, %v62
    %v123 = vmul.f32 %v113, %v63
    %v124 = vadd.f32 %v122, %v123
    %125 = vadd.xlane.f32.xlu0 %v124
    %v126 = vpop.xlane.xlu0 %125
    %v127 = vadd.f32 %v121, %v126
    %128 = vst.msk [vmem:[#allocation3] sm:$0xff] %vm119, %v127
    %v129 = vld [vmem:[#allocation4] sm:$0xff]
    %v130 = vadd.f32 %v112, %v113
    %131 = vadd.xlane.f32.xlu0 %v130
    %v132 = vpop.xlane.xlu0 %131
    %v133 = vadd.f32 %v129, %v132
    %134 = vst.msk [vmem:[#allocation4] sm:$0xff] %vm119, %v133
    %v135 = vld [vmem:[#allocation5] sm:$0xff]
    %v136 = vadd.f32 %v62, %v63
    %137 = vadd.xlane.f32.xlu0 %v136
    %v138 = vpop.xlane.xlu0 %137
    %v139 = vadd.f32 %v135, %v138
    %140 = vst.msk [vmem:[#allocation5] sm:$0xff] %vm119, %v139
    // Predicated region
    $region22: #{tpu_custom_call.1} parent=1 // pred_check
      %p141 = pneg %p51
    $region23: #{tpu_custom_call.1} parent=1 // pred_check_branch
      %143 = sbr.rel (%p141) target = $region25
    $region24: #{tpu_custom_call.1} parent=1 // pred_region
      %v144 = vld [vmem:[#allocation2] sm:$0xff]
      %v145 = vld [vmem:[#allocation3] sm:$0xff]
      %v146 = vld [vmem:[#allocation4] sm:$0xff]
      %v147 = vld [vmem:[#allocation5] sm:$0xff]
      %149 = vrot.lane.b32.xlu0 %v145, 1
      %v150 = vpop.permute.xlu0 %149
      %153 = vrot.lane.b32.xlu0 %v146, 2
      %v154 = vpop.permute.xlu0 %153
      %157 = vrot.lane.b32.xlu0 %v147, 3
      %v158 = vpop.permute.xlu0 %157
      %v160 = vsel %vm119, %v144, %v150
      %vm161 = vcmask 15360
      %v162 = vsel %vm161, %v160, %v154
      %vm163 = vcmask 23552
      %v164 = vsel %vm163, %v162, %v158
      %vm165 = vcmask 31744
      %166 = vst.msk [vmem:[%s2] sm:$0xff] %vm165, %v164
    $region25: #{tpu_custom_call.1} parent=1 // pred_fallthru
      _
    // Predicated region
    $region26: #{tpu_custom_call.1} parent=1 // pred_check
      _
    $region27: #{tpu_custom_call.1} parent=1 // pred_check_branch
      %168 = sbr.rel (0) target = $region29
    $region28: #{tpu_custom_call.1} parent=1 // pred_region
      _
    $region29: #{tpu_custom_call.1} parent=1 // pred_fallthru
      _
    // Predicated region
    $region30: #{tpu_custom_call.1} parent=1 // pred_check
      _
    $region31: #{tpu_custom_call.1} parent=1 // pred_check_branch
      %170 = sbr.rel (0) target = $region33
    $region32: #{tpu_custom_call.1} parent=1 // pred_region
      _
    $region33: #{tpu_custom_call.1} parent=1 // pred_fallthru
      _
    %171 = vsyncpa [#allocation7], 1
    %172 = vsyncpa [#allocation9], 1

</llo_original>
